<compile_context>
chip_gen: v5e
topology: v5e:2x2
jax: 0.10.0
libtpu: 0.0.40
codegen_flags: <defaults>
</compile_context>

<pallas_src>
import functools

import jax
import jax.numpy as jnp
from jax.experimental import pallas as pl

LANE = 128


def _round_up(d, m=LANE):
    return ((d + m - 1) // m) * m


def _gcn_fused_kernel(*refs, n_layers):
    """Fused multi-layer GCN: h_{i+1} = [relu]( A @ (h_i @ W_i + b_i) ).

    refs layout: (a_ref, x_ref, w_0..w_{L-1}, b_0..b_{L-1}, o_ref).
    All operands live entirely in VMEM (small graph); every dot hits the MXU
    with f32 accumulation; bias add + ReLU run on the f32 accumulator.
    """
    a_ref, x_ref = refs[0], refs[1]
    w_refs = refs[2:2 + n_layers]
    b_refs = refs[2 + n_layers:2 + 2 * n_layers]
    o_ref = refs[-1]

    cdt = a_ref.dtype                     # compute dtype fed to the MXU
    a = a_ref[...]
    h = x_ref[...]                        # already in cdt, lane-padded
    for i in range(n_layers):             # unrolled at trace time
        y = jnp.dot(h.astype(cdt), w_refs[i][...],
                    preferred_element_type=jnp.float32)
        y = y + b_refs[i][...]            # (1, out_pad) f32 bias broadcast
        y = jnp.dot(a, y.astype(cdt),
                    preferred_element_type=jnp.float32)
        if i < n_layers - 1:
            y = jnp.maximum(y, 0.0)       # ReLU on the f32 accumulator
        h = y
    o_ref[...] = h.astype(o_ref.dtype)


# --------------------------- one-time preparation ---------------------------

def prepare_gcn_params(params, compute_dtype=jnp.bfloat16):
    """One-time prep: transpose W to (in, out), zero-pad BOTH feature dims to
    multiples of 128 lanes, cast weights to the MXU compute dtype. Biases are
    kept in f32 (added to the f32 accumulator inside the kernel)."""
    prepared = []
    prev_pad = None  # padded width of the previous layer's output
    for (W, b) in params:
        out_f, in_f = W.shape
        in_pad = _round_up(in_f) if prev_pad is None else prev_pad
        out_pad = _round_up(out_f)
        W_t = jnp.zeros((in_pad, out_pad), jnp.float32)
        W_t = W_t.at[:in_f, :out_f].set(W.T)
        b_p = jnp.zeros((1, out_pad), jnp.float32).at[0, :out_f].set(b)
        prepared.append((W_t.astype(compute_dtype), b_p))
        prev_pad = out_pad
    return prepared


def prepare_gcn_inputs(A_norm, X, compute_dtype=jnp.bfloat16):
    """One-time prep of graph inputs (hoisted out of gcn_forward): cast the
    normalized adjacency to the compute dtype and zero-pad X's feature dim to
    128 lanes so layer 0's LHS is lane-dense."""
    N, in_f = X.shape
    in_pad = _round_up(in_f)
    X_p = jnp.zeros((N, in_pad), jnp.float32).at[:, :in_f].set(X)
    return A_norm.astype(compute_dtype), X_p.astype(compute_dtype)


# --------------------------------- forward ----------------------------------

def _whole_array_spec(op):
    """Whole-array BlockSpec for grid=() (rank bound per-operand, no late
    binding)."""
    return pl.BlockSpec(op.shape, lambda _r=op.ndim: (0,) * _r)


def gcn_forward(A_prep, X_prep, prepared_params, out_size):
    """Fused forward. `A_prep`/`X_prep` from prepare_gcn_inputs(),
    `prepared_params` from prepare_gcn_params() (same compute dtype)."""
    n_layers = len(prepared_params)
    N = X_prep.shape[0]
    out_pad = prepared_params[-1][0].shape[1]

    w_list = [w for (w, _) in prepared_params]
    b_list = [b for (_, b) in prepared_params]
    operands = [A_prep, X_prep] + w_list + b_list

    grid_spec = pl.GridSpec(
        grid=(),  # single program: whole-array blocks (tiny working set)
        in_specs=[_whole_array_spec(op) for op in operands],
        out_specs=pl.BlockSpec((N, out_pad), lambda: (0, 0)),
    )
    out_padded = pl.pallas_call(
        functools.partial(_gcn_fused_kernel, n_layers=n_layers),
        out_shape=jax.ShapeDtypeStruct((N, out_pad), jnp.float32),
        grid_spec=grid_spec,
    )(*operands)
    return out_padded[:, :out_size]


# ------------------------- parameter / input setup --------------------------

def _linear_init(key, out_f, in_f):
    """Deterministic init mimicking torch.nn.Linear (uniform +-1/sqrt(in_f))."""
    kw, kb = jax.random.split(key)
    bound = 1.0 / jnp.sqrt(jnp.float32(in_f))
    W = jax.random.uniform(kw, (out_f, in_f), jnp.float32, -bound, bound)
    b = jax.random.uniform(kb, (out_f,), jnp.float32, -bound, bound)
    return W, b


def _make_normalized_adjacency(key, n_nodes, p=0.15):
    """Dense symmetric D^-1/2 (A + I) D^-1/2, like a typical GCN A_norm."""
    upper = (jax.random.uniform(key, (n_nodes, n_nodes)) < p).astype(jnp.float32)
    A = jnp.triu(upper, k=1)
    A = A + A.T + jnp.eye(n_nodes, dtype=jnp.float32)  # symmetric + self-loops
    deg = A.sum(axis=1)
    d_inv_sqrt = 1.0 / jnp.sqrt(deg)
    return A * d_inv_sqrt[:, None] * d_inv_sqrt[None, :]


def _reference_forward(A, X, params):
    n_layers = len(params)
    for i, (W, b) in enumerate(params):
        X = A @ (X @ W.T + b)
        if i < n_layers - 1:
            X = jnp.maximum(X, 0.0)
    return X


if __name__ == "__main__":
    # Small shapes consistent with the module: num_layers=2 -> one hidden
    # Linear(in_size, hidden) + out_conv Linear(hidden, out_size).
    N_NODES = 64
    IN_SIZE = 32
    HIDDEN = 16
    OUT_SIZE = 8

    root = jax.random.PRNGKey(0)
    k_adj, k_x, k_l1, k_l2 = jax.random.split(root, 4)

    A_norm = _make_normalized_adjacency(k_adj, N_NODES)
    X = jax.random.normal(k_x, (N_NODES, IN_SIZE), jnp.float32)

    params = [
        _linear_init(k_l1, HIDDEN, IN_SIZE),   # weights[0]: Linear(in, hidden)
        _linear_init(k_l2, OUT_SIZE, HIDDEN),  # out_conv:   Linear(hidden, out)
    ]
    ref = _reference_forward(A_norm, X, params)

    # f32 compute path — exact-semantics check against the JAX reference.
    prepared_f32 = prepare_gcn_params(params, compute_dtype=jnp.float32)
    A_f32, X_f32 = prepare_gcn_inputs(A_norm, X, compute_dtype=jnp.float32)
    out = gcn_forward(A_f32, X_f32, prepared_f32, OUT_SIZE)
    out = jax.block_until_ready(out)
    assert out.shape == (N_NODES, OUT_SIZE)
    assert jnp.allclose(out, ref, atol=1e-4, rtol=1e-4), "f32 mismatch vs reference"

    # bf16 compute path (default; v5e/v6e/v7x MXU-native) — loose tolerance.
    # Note: bf16 adjacency loses precision for very high-degree nodes; errors
    # compound over two propagation steps. Acceptable at these tolerances.
    prepared_bf16 = prepare_gcn_params(params)            # default bf16
    A_bf16, X_bf16 = prepare_gcn_inputs(A_norm, X)        # default bf16
    out_bf16 = gcn_forward(A_bf16, X_bf16, prepared_bf16, OUT_SIZE)
    out_bf16 = jax.block_until_ready(out_bf16)
    assert out_bf16.shape == (N_NODES, OUT_SIZE)
    assert jnp.allclose(out_bf16, ref, atol=1e-1, rtol=1e-1), "bf16 mismatch vs reference"

    print("KERNEL_OK")
</pallas_src>

<mosaic_0001>
module attributes {stable_mosaic.version = 11 : i64} {
  func.func @_gcn_fused_kernel(%arg0: memref<64x64xf32, #tpu.memory_space<vmem>>, %arg1: memref<64x128xf32, #tpu.memory_space<vmem>>, %arg2: memref<128x128xf32, #tpu.memory_space<vmem>>, %arg3: memref<128x128xf32, #tpu.memory_space<vmem>>, %arg4: memref<1x128xf32, #tpu.memory_space<vmem>>, %arg5: memref<1x128xf32, #tpu.memory_space<vmem>>, %arg6: memref<64x128xf32, #tpu.memory_space<vmem>>) attributes {dimension_semantics = [], scalar_prefetch = 0 : i64, scratch_operands = 0 : i64, tpu.core_type = #tpu.core_type<tc>} {
    %c0 = arith.constant 0 : index
    %c0_0 = arith.constant 0 : index
    %0 = vector.load %arg0[%c0, %c0_0] : memref<64x64xf32, #tpu.memory_space<vmem>>, vector<64x64xf32>
    %c0_1 = arith.constant 0 : index
    %c0_2 = arith.constant 0 : index
    %1 = vector.load %arg1[%c0_1, %c0_2] : memref<64x128xf32, #tpu.memory_space<vmem>>, vector<64x128xf32>
    %c0_3 = arith.constant 0 : index
    %c0_4 = arith.constant 0 : index
    %2 = vector.load %arg2[%c0_3, %c0_4] : memref<128x128xf32, #tpu.memory_space<vmem>>, vector<128x128xf32>
    %cst = arith.constant dense<0.000000e+00> : vector<64x128xf32>
    %3 = tpu.matmul %1, %2, %cst {dimension_numbers = #tpu.dot_dimension_numbers<[1], [0], [0], [1], [0, 0, 1, 1], [], []>} : vector<64x128xf32>, vector<128x128xf32>, vector<64x128xf32> -> vector<64x128xf32>
    %c0_5 = arith.constant 0 : index
    %c0_6 = arith.constant 0 : index
    %4 = vector.load %arg4[%c0_5, %c0_6] : memref<1x128xf32, #tpu.memory_space<vmem>>, vector<1x128xf32>
    %5 = vector.broadcast %4 : vector<1x128xf32> to vector<64x128xf32>
    %6 = arith.addf %3, %5 : vector<64x128xf32>
    %cst_7 = arith.constant dense<0.000000e+00> : vector<64x128xf32>
    %7 = tpu.matmul %0, %6, %cst_7 {dimension_numbers = #tpu.dot_dimension_numbers<[1], [0], [0], [1], [0, 0, 1, 1], [], []>} : vector<64x64xf32>, vector<64x128xf32>, vector<64x128xf32> -> vector<64x128xf32>
    %cst_8 = arith.constant 0.000000e+00 : f32
    %8 = vector.broadcast %cst_8 : f32 to vector<64x128xf32>
    %9 = arith.maximumf %7, %8 : vector<64x128xf32>
    %c0_9 = arith.constant 0 : index
    %c0_10 = arith.constant 0 : index
    %10 = vector.load %arg3[%c0_9, %c0_10] : memref<128x128xf32, #tpu.memory_space<vmem>>, vector<128x128xf32>
    %cst_11 = arith.constant dense<0.000000e+00> : vector<64x128xf32>
    %11 = tpu.matmul %9, %10, %cst_11 {dimension_numbers = #tpu.dot_dimension_numbers<[1], [0], [0], [1], [0, 0, 1, 1], [], []>} : vector<64x128xf32>, vector<128x128xf32>, vector<64x128xf32> -> vector<64x128xf32>
    %c0_12 = arith.constant 0 : index
    %c0_13 = arith.constant 0 : index
    %12 = vector.load %arg5[%c0_12, %c0_13] : memref<1x128xf32, #tpu.memory_space<vmem>>, vector<1x128xf32>
    %13 = vector.broadcast %12 : vector<1x128xf32> to vector<64x128xf32>
    %14 = arith.addf %11, %13 : vector<64x128xf32>
    %cst_14 = arith.constant dense<0.000000e+00> : vector<64x128xf32>
    %15 = tpu.matmul %0, %14, %cst_14 {dimension_numbers = #tpu.dot_dimension_numbers<[1], [0], [0], [1], [0, 0, 1, 1], [], []>} : vector<64x64xf32>, vector<64x128xf32>, vector<64x128xf32> -> vector<64x128xf32>
    %c0_15 = arith.constant 0 : index
    %c0_16 = arith.constant 0 : index
    %16 = vector.load %arg6[%c0_15, %c0_16] : memref<64x128xf32, #tpu.memory_space<vmem>>, vector<64x128xf32>
    tpu.vector_store %arg6[%c0_15, %c0_16], %15 {strides = array<i32>} : memref<64x128xf32, #tpu.memory_space<vmem>>, vector<64x128xf32>,
    return
  }
}

</mosaic_0001>

<llo_original>
// kernel: tpu_custom_call.1
$region0: #{tpu_custom_call.1}
  #allocation0 [shape = 'u32[]', space=smem, size = 0x4, offset = 0x4, fixed_abs, tag = 'smem constant byte address 0x4 - core index']
  #allocation1 [shape = 'u32[72,128]{1,0:T(1,128)}', space=vmem, size = 0x9000, scoped, tag = 'internal scratch']
  %s0 = inlined_call_operand.hbm [shape: f32[64,64], index: 0, kind: input, shape index: {}]
  %s1 = inlined_call_operand.hbm [shape: f32[64,128], index: 1, kind: input, shape index: {}]
  %s2 = inlined_call_operand.hbm [shape: f32[128,128], index: 2, kind: input, shape index: {}]
  %s3 = inlined_call_operand.hbm [shape: f32[128,128], index: 3, kind: input, shape index: {}]
  %s4 = inlined_call_operand.vmem [shape: f32[1,128], index: 4, kind: input, shape index: {}]
  %s5 = inlined_call_operand.vmem [shape: f32[1,128], index: 5, kind: input, shape index: {}]
  %s6 = inlined_call_operand.hbm [shape: f32[64,128], index: 6, kind: output, shape index: {}]
  %s7 = sld [smem:[#allocation0]]
  $region50: #{tpu_custom_call.1} parent=0
    _
  %s9 = ssub.s32 1, %s7
  %s10 = scalar_select 0, %s9, %s7
  $region1: #{tpu_custom_call.1} parent=0
    #allocation2 [shape = 'u8[32768]{0}', space=vmem, size = 0x8000, scoped, tag = 'input window, operand 0, single buffered']
    #allocation3 [shape = 's32[1]{0}', space=sflag, size = 0x4, scoped, tag = 'scoped memory for tpu_custom_call.1']
    #allocation4 [shape = 's32[1]{0}', space=sflag, size = 0x4, scoped, tag = 'scoped memory for tpu_custom_call.1']
    #allocation5 [shape = 'u8[32768]{0}', space=vmem, size = 0x8000, scoped, tag = 'input window, operand 1, single buffered']
    #allocation6 [shape = 's32[1]{0}', space=sflag, size = 0x4, scoped, tag = 'scoped memory for tpu_custom_call.1']
    #allocation7 [shape = 'u8[65536]{0}', space=vmem, size = 0x10000, scoped, tag = 'input window, operand 2, single buffered']
    #allocation8 [shape = 'u8[65536]{0}', space=vmem, size = 0x10000, scoped, tag = 'input window, operand 3, single buffered']
    #allocation9 [shape = 's32[1]{0}', space=sflag, size = 0x4, scoped, tag = 'scoped memory for tpu_custom_call.1']
    #allocation10 [shape = 'u8[32768]{0}', space=vmem, size = 0x8000, scoped, tag = 'output window, operand 0, single buffered']
    %11 = vsyncpa [#allocation3], 0
    %12 = vsyncpa [#allocation6], 0
    %13 = vsyncpa [#allocation9], 0
    %14 = vsyncpa [#allocation4], 0
    // Predicated region
    $region2: #{tpu_custom_call.1} parent=1 // pred_check
      _
    $region3: #{tpu_custom_call.1} parent=1 // pred_check_branch
      %16 = sbr.rel (0) target = $region5
    $region4: #{tpu_custom_call.1} parent=1 // pred_region
      %18 = vsyncadd [#allocation3], 0
      %s19 = sshll.u32 %s0, 4
      %s20 = int_to_ptr.hbm [resolvable:$true] %s19
      %s21 = sshll.u32 [#allocation2], 4
      %s22 = int_to_ptr.vmem [resolvable:$true] %s21
      %27 = dma.hbm_to_vmem [thread:$0]  %s20, 1024, %s22, [#allocation3], 128, 128, 8
    $region5: #{tpu_custom_call.1} parent=1 // pred_fallthru
      _
    // Predicated region
    $region6: #{tpu_custom_call.1} parent=1 // pred_check
      _
    $region7: #{tpu_custom_call.1} parent=1 // pred_check_branch
      %29 = sbr.rel (0) target = $region9
    $region8: #{tpu_custom_call.1} parent=1 // pred_region
      %31 = vsyncadd [#allocation6], 0
      %s32 = sshll.u32 %s1, 4
      %s33 = int_to_ptr.hbm [resolvable:$true] %s32
      %s34 = sshll.u32 [#allocation5], 4
      %s35 = int_to_ptr.vmem [resolvable:$true] %s34
      %40 = dma.hbm_to_vmem [thread:$0]  %s33, 1024, %s35, [#allocation6], 128, 128, 8
    $region9: #{tpu_custom_call.1} parent=1 // pred_fallthru
      _
    // Predicated region
    $region10: #{tpu_custom_call.1} parent=1 // pred_check
      _
    $region11: #{tpu_custom_call.1} parent=1 // pred_check_branch
      %42 = sbr.rel (0) target = $region13
    $region12: #{tpu_custom_call.1} parent=1 // pred_region
      %44 = vsyncadd [#allocation6], 0
      %s45 = sshll.u32 %s2, 4
      %s46 = int_to_ptr.hbm [resolvable:$true] %s45
      %s47 = sshll.u32 [#allocation7], 4
      %s48 = int_to_ptr.vmem [resolvable:$true] %s47
      %53 = dma.hbm_to_vmem [thread:$0]  %s46, 2048, %s48, [#allocation6], 128, 128, 8
    $region13: #{tpu_custom_call.1} parent=1 // pred_fallthru
      _
    // Predicated region
    $region14: #{tpu_custom_call.1} parent=1 // pred_check
      _
    $region15: #{tpu_custom_call.1} parent=1 // pred_check_branch
      %55 = sbr.rel (0) target = $region17
    $region16: #{tpu_custom_call.1} parent=1 // pred_region
      %57 = vsyncadd [#allocation9], 0
      %s58 = sshll.u32 %s3, 4
      %s59 = int_to_ptr.hbm [resolvable:$true] %s58
      %s60 = sshll.u32 [#allocation8], 4
      %s61 = int_to_ptr.vmem [resolvable:$true] %s60
      %66 = dma.hbm_to_vmem [thread:$0]  %s59, 2048, %s61, [#allocation9], 128, 128, 8
    $region17: #{tpu_custom_call.1} parent=1 // pred_fallthru
      _
    // Predicated region
    $region18: #{tpu_custom_call.1} parent=1 // pred_check
      _
    $region19: #{tpu_custom_call.1} parent=1 // pred_check_branch
      %68 = sbr.rel (0) target = $region21
    $region20: #{tpu_custom_call.1} parent=1 // pred_region
      _
    $region21: #{tpu_custom_call.1} parent=1 // pred_fallthru
      _
    // Predicated region
    $region22: #{tpu_custom_call.1} parent=1 // pred_check
      _
    $region23: #{tpu_custom_call.1} parent=1 // pred_check_branch
      %70 = sbr.rel (0) target = $region25
    $region24: #{tpu_custom_call.1} parent=1 // pred_region
      _
    $region25: #{tpu_custom_call.1} parent=1 // pred_fallthru
      _
    // Predicated region
    $region26: #{tpu_custom_call.1} parent=1 // pred_check
      _
    $region27: #{tpu_custom_call.1} parent=1 // pred_check_branch
      %72 = sbr.rel (0) target = $region29
    $region28: #{tpu_custom_call.1} parent=1 // pred_region
      %74 = dma.done [#allocation3], 1024
    $region29: #{tpu_custom_call.1} parent=1 // pred_fallthru
      _
    // Predicated region
    $region30: #{tpu_custom_call.1} parent=1 // pred_check
      _
    $region31: #{tpu_custom_call.1} parent=1 // pred_check_branch
      %76 = sbr.rel (0) target = $region33
    $region32: #{tpu_custom_call.1} parent=1 // pred_region
      %78 = dma.done [#allocation6], 1024
    $region33: #{tpu_custom_call.1} parent=1 // pred_fallthru
      _
    // Predicated region
    $region34: #{tpu_custom_call.1} parent=1 // pred_check
      _
    $region35: #{tpu_custom_call.1} parent=1 // pred_check_branch
      %80 = sbr.rel (0) target = $region37
    $region36: #{tpu_custom_call.1} parent=1 // pred_region
      %82 = dma.done [#allocation6], 2048
    $region37: #{tpu_custom_call.1} parent=1 // pred_fallthru
      _
    // Predicated region
    $region38: #{tpu_custom_call.1} parent=1 // pred_check
      _
    $region39: #{tpu_custom_call.1} parent=1 // pred_check_branch
      %84 = sbr.rel (0) target = $region41
    $region40: #{tpu_custom_call.1} parent=1 // pred_region
      %86 = dma.done [#allocation9], 2048
    $region41: #{tpu_custom_call.1} parent=1 // pred_fallthru
      _
    %v87 = vld [vmem:[#allocation2] sm:$0xff]
    %v88 = vld [vmem:[#allocation2 + $0x8] sm:$0xff]
    %v89 = vld [vmem:[#allocation2 + $0x10] sm:$0xff]
    %v90 = vld [vmem:[#allocation2 + $0x18] sm:$0xff]
    %v91 = vld [vmem:[#allocation2 + $0x20] sm:$0xff]
    %v92 = vld [vmem:[#allocation2 + $0x28] sm:$0xff]
    %v93 = vld [vmem:[#allocation2 + $0x30] sm:$0xff]
    %v94 = vld [vmem:[#allocation2 + $0x38] sm:$0xff]
    %v95 = vld [vmem:[#allocation5] sm:$0xff]
    %v96 = vld [vmem:[#allocation5 + $0x8] sm:$0xff]
    %v97 = vld [vmem:[#allocation5 + $0x10] sm:$0xff]
    %v98 = vld [vmem:[#allocation5 + $0x18] sm:$0xff]
    %v99 = vld [vmem:[#allocation5 + $0x20] sm:$0xff]
    %v100 = vld [vmem:[#allocation5 + $0x28] sm:$0xff]
    %v101 = vld [vmem:[#allocation5 + $0x30] sm:$0xff]
    %v102 = vld [vmem:[#allocation5 + $0x38] sm:$0xff]
    %v103 = vld [vmem:[#allocation7] sm:$0xff]
    %v104 = vld [vmem:[#allocation7 + $0x8] sm:$0xff]
    %v105 = vld [vmem:[#allocation7 + $0x10] sm:$0xff]
    %v106 = vld [vmem:[#allocation7 + $0x18] sm:$0xff]
    %v107 = vld [vmem:[#allocation7 + $0x20] sm:$0xff]
    %v108 = vld [vmem:[#allocation7 + $0x28] sm:$0xff]
    %v109 = vld [vmem:[#allocation7 + $0x30] sm:$0xff]
    %v110 = vld [vmem:[#allocation7 + $0x38] sm:$0xff]
    %v111 = vld [vmem:[#allocation7 + $0x40] sm:$0xff]
    %v112 = vld [vmem:[#allocation7 + $0x48] sm:$0xff]
    %v113 = vld [vmem:[#allocation7 + $0x50] sm:$0xff]
    %v114 = vld [vmem:[#allocation7 + $0x58] sm:$0xff]
    %v115 = vld [vmem:[#allocation7 + $0x60] sm:$0xff]
    %v116 = vld [vmem:[#allocation7 + $0x68] sm:$0xff]
    %v117 = vld [vmem:[#allocation7 + $0x70] sm:$0xff]
    %v118 = vld [vmem:[#allocation7 + $0x78] sm:$0xff]
    %v119 = vld [vmem:[%s4] sm:$0x1]
    %v121 = vperm.slane %v119, 0
    %123 = vmatpush.msra.mxu0 %v118
    %124 = vmatpush.msra.mxu0 %v117
    %125 = vmatpush.msra.mxu0 %v116
    %126 = vmatpush.msra.mxu0 %v115
    %127 = vmatpush.msra.mxu0 %v114
    %128 = vmatpush.msra.mxu0 %v113
    %129 = vmatpush.msra.mxu0 %v112
    %130 = vmatpush.msra.mxu0 %v111
    %131 = vmatpush.msra.mxu0 %v110
    %132 = vmatpush.msra.mxu0 %v109
    %133 = vmatpush.msra.mxu0 %v108
    %134 = vmatpush.msra.mxu0 %v107
    %135 = vmatpush.msra.mxu0 %v106
    %136 = vmatpush.msra.mxu0 %v105
    %137 = vmatpush.msra.mxu0 %v104
    %138 = vmatpush.msra.mxu0 %v103
    %139 = vmatmul.f32.gmra.mxu0 %v95
    %v140 = vpop.f32.mrf.mxu0
    %v141 = vadd.f32 %v121, %v140
    %142 = vmatmul.f32.gmra.mxu0 %v96
    %v143 = vpop.f32.mrf.mxu0
    %v144 = vadd.f32 %v121, %v143
    %145 = vmatmul.f32.gmra.mxu0 %v97
    %v146 = vpop.f32.mrf.mxu0
    %v147 = vadd.f32 %v121, %v146
    %148 = vmatmul.f32.gmra.mxu0 %v98
    %v149 = vpop.f32.mrf.mxu0
    %v150 = vadd.f32 %v121, %v149
    %151 = vmatmul.f32.gmra.mxu0 %v99
    %v152 = vpop.f32.mrf.mxu0
    %v153 = vadd.f32 %v121, %v152
    %154 = vmatmul.f32.gmra.mxu0 %v100
    %v155 = vpop.f32.mrf.mxu0
    %v156 = vadd.f32 %v121, %v155
    %157 = vmatmul.f32.gmra.mxu0 %v101
    %v158 = vpop.f32.mrf.mxu0
    %v159 = vadd.f32 %v121, %v158
    %160 = vmatmul.f32.gmra.mxu0 %v102
    %v161 = vpop.f32.mrf.mxu0
    %v162 = vadd.f32 %v121, %v161
    %163 = vdwg.mxu0
    %vm164 = vcmask 523264
    %v166 = vsel %vm164, %v87, 0
    %v169 = vsel %vm164, %v88, 0
    %v172 = vsel %vm164, %v89, 0
    %v175 = vsel %vm164, %v90, 0
    %v178 = vsel %vm164, %v91, 0
    %v181 = vsel %vm164, %v92, 0
    %v184 = vsel %vm164, %v93, 0
    %v187 = vsel %vm164, %v94, 0
    %189 = vmatpush.msra.mxu0 0.0
    %190 = vmatpush.msra.mxu0 0.0
    %191 = vmatpush.msra.mxu0 0.0
    %192 = vmatpush.msra.mxu0 0.0
    %193 = vmatpush.msra.mxu0 0.0
    %194 = vmatpush.msra.mxu0 0.0
    %195 = vmatpush.msra.mxu0 0.0
    %196 = vmatpush.msra.mxu0 0.0
    %197 = vmatpush.msra.mxu0 %v162
    %198 = vmatpush.msra.mxu0 %v159
    %199 = vmatpush.msra.mxu0 %v156
    %200 = vmatpush.msra.mxu0 %v153
    %201 = vmatpush.msra.mxu0 %v150
    %202 = vmatpush.msra.mxu0 %v147
    %203 = vmatpush.msra.mxu0 %v144
    %204 = vmatpush.msra.mxu0 %v141
    %205 = vmatmul.f32.gmra.mxu0 %v166
    %v206 = vpop.f32.mrf.mxu0
    %v207 = vadd.f32 0.0, %v206
    %208 = vmatmul.f32.gmra.mxu0 %v169
    %v209 = vpop.f32.mrf.mxu0
    %v210 = vadd.f32 0.0, %v209
    %211 = vmatmul.f32.gmra.mxu0 %v172
    %v212 = vpop.f32.mrf.mxu0
    %v213 = vadd.f32 0.0, %v212
    %214 = vmatmul.f32.gmra.mxu0 %v175
    %v215 = vpop.f32.mrf.mxu0
    %v216 = vadd.f32 0.0, %v215
    %217 = vmatmul.f32.gmra.mxu0 %v178
    %v218 = vpop.f32.mrf.mxu0
    %v219 = vadd.f32 0.0, %v218
    %220 = vmatmul.f32.gmra.mxu0 %v181
    %v221 = vpop.f32.mrf.mxu0
    %v222 = vadd.f32 0.0, %v221
    %223 = vmatmul.f32.gmra.mxu0 %v184
    %v224 = vpop.f32.mrf.mxu0
    %v225 = vadd.f32 0.0, %v224
    %226 = vmatmul.f32.gmra.mxu0 %v187
    %v227 = vpop.f32.mrf.mxu0
    %v228 = vadd.f32 0.0, %v227
    %229 = vdwg.mxu0
    %v230 = vmax.f32 %v207, 0.0
    %v231 = vmax.f32 %v210, 0.0
    %v232 = vmax.f32 %v213, 0.0
    %v233 = vmax.f32 %v216, 0.0
    %v234 = vmax.f32 %v219, 0.0
    %v235 = vmax.f32 %v222, 0.0
    %v236 = vmax.f32 %v225, 0.0
    %v237 = vmax.f32 %v228, 0.0
    %v238 = vld [vmem:[#allocation8] sm:$0xff]
    %v239 = vld [vmem:[#allocation8 + $0x8] sm:$0xff]
    %v240 = vld [vmem:[#allocation8 + $0x10] sm:$0xff]
    %v241 = vld [vmem:[#allocation8 + $0x18] sm:$0xff]
    %v242 = vld [vmem:[#allocation8 + $0x20] sm:$0xff]
    %v243 = vld [vmem:[#allocation8 + $0x28] sm:$0xff]
    %v244 = vld [vmem:[#allocation8 + $0x30] sm:$0xff]
    %v245 = vld [vmem:[#allocation8 + $0x38] sm:$0xff]
    %v246 = vld [vmem:[#allocation8 + $0x40] sm:$0xff]
    %v247 = vld [vmem:[#allocation8 + $0x48] sm:$0xff]
    %v248 = vld [vmem:[#allocation8 + $0x50] sm:$0xff]
    %v249 = vld [vmem:[#allocation8 + $0x58] sm:$0xff]
    %v250 = vld [vmem:[#allocation8 + $0x60] sm:$0xff]
    %v251 = vld [vmem:[#allocation8 + $0x68] sm:$0xff]
    %v252 = vld [vmem:[#allocation8 + $0x70] sm:$0xff]
    %v253 = vld [vmem:[#allocation8 + $0x78] sm:$0xff]
    %v254 = vld [vmem:[%s5] sm:$0x1]
    %v256 = vperm.slane %v254, 0
    %258 = vmatpush.msra.mxu0 %v253
    %259 = vmatpush.msra.mxu0 %v252
    %260 = vmatpush.msra.mxu0 %v251
    %261 = vmatpush.msra.mxu0 %v250
    %262 = vmatpush.msra.mxu0 %v249
    %263 = vmatpush.msra.mxu0 %v248
    %264 = vmatpush.msra.mxu0 %v247
    %265 = vmatpush.msra.mxu0 %v246
    %266 = vmatpush.msra.mxu0 %v245
    %267 = vmatpush.msra.mxu0 %v244
    %268 = vmatpush.msra.mxu0 %v243
    %269 = vmatpush.msra.mxu0 %v242
    %270 = vmatpush.msra.mxu0 %v241
    %271 = vmatpush.msra.mxu0 %v240
    %272 = vmatpush.msra.mxu0 %v239
    %273 = vmatpush.msra.mxu0 %v238
    %274 = vmatmul.f32.gmra.mxu0 %v230
    %v275 = vpop.f32.mrf.mxu0
    %v276 = vadd.f32 %v256, %v275
    %277 = vmatmul.f32.gmra.mxu0 %v231
    %v278 = vpop.f32.mrf.mxu0
    %v279 = vadd.f32 %v256, %v278
    %280 = vmatmul.f32.gmra.mxu0 %v232
    %v281 = vpop.f32.mrf.mxu0
    %v282 = vadd.f32 %v256, %v281
    %283 = vmatmul.f32.gmra.mxu0 %v233
    %v284 = vpop.f32.mrf.mxu0
    %v285 = vadd.f32 %v256, %v284
    %286 = vmatmul.f32.gmra.mxu0 %v234
    %v287 = vpop.f32.mrf.mxu0
    %v288 = vadd.f32 %v256, %v287
    %289 = vmatmul.f32.gmra.mxu0 %v235
    %v290 = vpop.f32.mrf.mxu0
    %v291 = vadd.f32 %v256, %v290
    %292 = vmatmul.f32.gmra.mxu0 %v236
    %v293 = vpop.f32.mrf.mxu0
    %v294 = vadd.f32 %v256, %v293
    %295 = vmatmul.f32.gmra.mxu0 %v237
    %v296 = vpop.f32.mrf.mxu0
    %v297 = vadd.f32 %v256, %v296
    %298 = vdwg.mxu0
    %299 = vmatpush.msra.mxu0 0.0
    %300 = vmatpush.msra.mxu0 0.0
    %301 = vmatpush.msra.mxu0 0.0
    %302 = vmatpush.msra.mxu0 0.0
    %303 = vmatpush.msra.mxu0 0.0
    %304 = vmatpush.msra.mxu0 0.0
    %305 = vmatpush.msra.mxu0 0.0
    %306 = vmatpush.msra.mxu0 0.0
    %307 = vmatpush.msra.mxu0 %v297
    %308 = vmatpush.msra.mxu0 %v294
    %309 = vmatpush.msra.mxu0 %v291
    %310 = vmatpush.msra.mxu0 %v288
    %311 = vmatpush.msra.mxu0 %v285
    %312 = vmatpush.msra.mxu0 %v282
    %313 = vmatpush.msra.mxu0 %v279
    %314 = vmatpush.msra.mxu0 %v276
    %315 = vmatmul.f32.gmra.mxu0 %v166
    %v316 = vpop.f32.mrf.mxu0
    %v317 = vadd.f32 0.0, %v316
    %318 = vmatmul.f32.gmra.mxu0 %v169
    %v319 = vpop.f32.mrf.mxu0
    %v320 = vadd.f32 0.0, %v319
    %321 = vmatmul.f32.gmra.mxu0 %v172
    %v322 = vpop.f32.mrf.mxu0
    %v323 = vadd.f32 0.0, %v322
    %324 = vmatmul.f32.gmra.mxu0 %v175
    %v325 = vpop.f32.mrf.mxu0
    %v326 = vadd.f32 0.0, %v325
    %327 = vmatmul.f32.gmra.mxu0 %v178
    %v328 = vpop.f32.mrf.mxu0
    %v329 = vadd.f32 0.0, %v328
    %330 = vmatmul.f32.gmra.mxu0 %v181
    %v331 = vpop.f32.mrf.mxu0
    %v332 = vadd.f32 0.0, %v331
    %333 = vmatmul.f32.gmra.mxu0 %v184
    %v334 = vpop.f32.mrf.mxu0
    %v335 = vadd.f32 0.0, %v334
    %336 = vmatmul.f32.gmra.mxu0 %v187
    %v337 = vpop.f32.mrf.mxu0
    %v338 = vadd.f32 0.0, %v337
    %339 = vdwg.mxu0
    %340 = vst [vmem:[#allocation10] sm:$0xff] %v317
    %341 = vst [vmem:[#allocation10 + $0x8] sm:$0xff] %v320
    %342 = vst [vmem:[#allocation10 + $0x10] sm:$0xff] %v323
    %343 = vst [vmem:[#allocation10 + $0x18] sm:$0xff] %v326
    %344 = vst [vmem:[#allocation10 + $0x20] sm:$0xff] %v329
    %345 = vst [vmem:[#allocation10 + $0x28] sm:$0xff] %v332
    %346 = vst [vmem:[#allocation10 + $0x30] sm:$0xff] %v335
    %347 = vst [vmem:[#allocation10 + $0x38] sm:$0xff] %v338
    // Predicated region
    $region42: #{tpu_custom_call.1} parent=1 // pred_check
      _
    $region43: #{tpu_custom_call.1} parent=1 // pred_check_branch
      %349 = sbr.rel (0) target = $region45
    $region44: #{tpu_custom_call.1} parent=1 // pred_region
      %351 = vsyncadd [#allocation4], 0
      %s352 = sshll.u32 [#allocation10], 4
      %s353 = int_to_ptr.vmem [resolvable:$true] %s352
      %s354 = sshll.u32 %s6, 4
      %s355 = int_to_ptr.hbm [resolvable:$true] %s354
      %360 = dma.vmem_to_hbm [thread:$0]  %s353, 1024, %s355, [#allocation4], 128, 128, 8
    $region45: #{tpu_custom_call.1} parent=1 // pred_fallthru
      _
    // Predicated region
    $region46: #{tpu_custom_call.1} parent=1 // pred_check
      _
    $region47: #{tpu_custom_call.1} parent=1 // pred_check_branch
      %362 = sbr.rel (0) target = $region49
    $region48: #{tpu_custom_call.1} parent=1 // pred_region
      %364 = dma.done [#allocation4], 1024
    $region49: #{tpu_custom_call.1} parent=1 // pred_fallthru
      _
    %365 = vsyncpa [#allocation3], 1
    %366 = vsyncpa [#allocation6], 1
    %367 = vsyncpa [#allocation9], 1
    %368 = vsyncpa [#allocation4], 1

</llo_original>
